<compile_context>
chip_gen: v6e
topology: v6e:2x2x1
jax: 0.10.0
libtpu: 0.0.40
codegen_flags: <defaults>
</compile_context>

<pallas_src>
import jax
import jax.numpy as jnp
from jax.experimental import pallas as pl
from jax.experimental.pallas import tpu as pltpu


def _round_up(x, m):
    return (x + m - 1) // m * m


def _cdiv(a, b):
    return -(-a // b)


# -----------------------------------------------------------------------------
# Optional single-buffering of the constant-index weight/bias blocks.
# BlockSpec double-buffers every input by default; pl.Buffered(1) halves the
# resident weight slab.  Probe it once with a tiny kernel and fall back to the
# default if this JAX/Mosaic build rejects the pipeline_mode argument.
# -----------------------------------------------------------------------------
def _probe_single_buffer_mode():
    try:
        mode = pl.Buffered(1)

        def _copy(x_ref, o_ref):
            o_ref[...] = x_ref[...]

        out = pl.pallas_call(
            _copy,
            out_shape=jax.ShapeDtypeStruct((8, 128), jnp.float32),
            grid=(1,),
            in_specs=[pl.BlockSpec((8, 128), lambda i: (0, 0),
                                   pipeline_mode=mode)],
            out_specs=pl.BlockSpec((8, 128), lambda i: (0, 0)),
        )(jnp.zeros((8, 128), jnp.float32))
        jax.block_until_ready(out)
        return mode
    except Exception:
        return None


_SINGLE_BUFFER_MODE = _probe_single_buffer_mode()


def _expand_block_kernel(x_ref, w_ref, b_ref, o_ref):
    # x_ref: (Nb, Ho+2, Kb)  bf16 zero-padded rows, lane-padded (w, cin) cols
    # w_ref: (3*Kb, Ct)      bf16 banded fused weight, one output-column tile
    # b_ref: (1, Ct)         f32 fused bias (zero on padded columns)
    # o_ref: (Nb, Ho, Ct)    lane-dense output tile
    nb, hin, kb = x_ref.shape
    ho = o_ref.shape[1]
    ct = o_ref.shape[2]

    # One aligned full-tile load, upcast once: the three kh row-band slices
    # and the lane concat then run on f32 (plain aligned sublane/lane copies;
    # keeps odd-offset packed-bf16 sublane shifts off the lowering path).
    # The A tile is cast back to bf16 right before the single fat-K MXU push
    # (f32 accumulation); the casts are VPU filler hidden under the MXU.
    x = x_ref[...].astype(jnp.float32)
    bands = jnp.concatenate([x[:, kh:kh + ho, :] for kh in range(3)], axis=-1)
    a = bands.reshape(nb * ho, 3 * kb).astype(jnp.bfloat16)

    y = jnp.dot(a, w_ref[...], preferred_element_type=jnp.float32)
    y = jnp.maximum(y + b_ref[...], 0.0)          # f32 bias + ReLU epilogue
    o_ref[...] = y.reshape(nb, ho, ct).astype(o_ref.dtype)


def _build_banded_weight(w1, w3, Cin, Cx1, Cx3, W, Kb, WCp):
    """B[(kh, wp, ci), (w, c)] = Wc[kh, wp - w, ci, c] for wp - w in {0,1,2}.

    Wc is the combined 3x3 weight with the 1x1 branch folded into the centre
    tap of its first Cx1 output channels.  Rows are lane-padded to Kb per tap
    and columns are padded to WCp (both zero-filled).  Returned as bf16."""
    Wp = W + 2
    w1_taps = jnp.zeros((3, 3, Cin, Cx1), w1.dtype).at[1, 1].set(w1)
    wc = jnp.concatenate([w1_taps, w3], axis=-1)                # (3,3,Cin,Cout)

    kw_idx = jnp.arange(Wp)[:, None] - jnp.arange(W)[None, :]   # (Wp, W): wp-w
    valid = (kw_idx >= 0) & (kw_idx <= 2)
    kw_clamped = jnp.clip(kw_idx, 0, 2)

    b = wc[:, kw_clamped, :, :]                                 # (3,Wp,W,Cin,Cout)
    b = jnp.where(valid[None, :, :, None, None], b, jnp.zeros((), wc.dtype))
    b = jnp.transpose(b, (0, 1, 3, 2, 4))                       # (3,Wp,Cin,W,Cout)
    b = b.reshape(3, Wp * Cin, -1)
    b = jnp.pad(b, ((0, 0), (0, Kb - Wp * Cin), (0, WCp - b.shape[-1])))
    return b.reshape(3 * Kb, WCp).astype(jnp.bfloat16)


def _plan_tiles(N, Hpad, Kb, WC0, out_itemsize):
    """Pick (Nb, Ct, WCp, grid_c, vmem_limit) from static shapes only.

    Nb fills the MXU M dimension (target Nb*Hpad >= 256 rows) within a
    generation-aware VMEM budget; Ct (output-column tile, multiple of 128)
    bounds the resident banded-weight slab."""
    try:
        info = pltpu.get_tpu_info()
        vmem_cap = int(info.vmem_capacity_bytes)
        n_cores = int(getattr(info, "num_cores", 1))
    except Exception:
        vmem_cap, n_cores = 64 << 20, 1          # v7x worst case

    vmem_limit = min(vmem_cap * 3 // 4, 96 << 20)
    budget = vmem_limit * 2 // 3                 # headroom for compiler scratch

    # --- output-column tile: keep the (double-buffered) weight tile small ---
    w_row = 3 * Kb
    ct = (budget // 3) // (2 * w_row * 2)        # 2 bufs x bf16 bytes
    ct = max(128, ct // 128 * 128)
    ct = min(ct, _round_up(WC0, 128))
    WCp = _round_up(_round_up(WC0, 128), ct)
    grid_c = WCp // ct

    # --- batch tile: per-image VMEM once the weight tile is resident --------
    hin = Hpad + 2
    per_img = (2 * hin * Kb * 2                  # double-buffered bf16 input
               + 2 * Hpad * ct * out_itemsize    # double-buffered output
               + hin * Kb * 4                    # f32 upcast of the input tile
               + Hpad * 3 * Kb * 4               # f32 band / A temporaries
               + Hpad * ct * 4)                  # f32 matmul result
    w_bufs = 1 if (_SINGLE_BUFFER_MODE is not None and grid_c == 1) else 2
    w_resident = w_bufs * w_row * ct * 2
    avail = max(budget - w_resident, per_img)

    nb = max(1, min(N, _cdiv(256, Hpad)))        # fill M to ~256 rows
    if n_cores >= 2 and N >= 2 and _cdiv(N, 2) * Hpad >= 128:
        nb = min(nb, _cdiv(N, 2))                # keep >=2 steps for 2 TCs
    nb = max(1, min(nb, avail // per_img))
    return nb, ct, WCp, grid_c, vmem_limit


def expand_block_forward(x_nchw, w1, b1, w3, b3):
    """x_nchw: (N, Cin, H, W); w1: (Cin, Cx1); b1: (Cx1,);
       w3: (3, 3, Cin, Cx3); b3: (Cx3,).  Returns (N, Cx1+Cx3, H, W)."""
    N, Cin, H, W = x_nchw.shape
    Cx1, Cx3 = w1.shape[-1], w3.shape[-1]
    Cout = Cx1 + Cx3
    Wp = W + 2

    Hpad = _round_up(H, 8)                # layout-free leading reshapes
    Kb = _round_up(Wp * Cin, 128)         # lane-aligned (w, cin) band width
    WC0 = W * Cout
    out_itemsize = jnp.dtype(x_nchw.dtype).itemsize

    nb, ct, WCp, grid_c, vmem_limit = _plan_tiles(N, Hpad, Kb, WC0, out_itemsize)
    grid_n = _cdiv(N, nb)
    Npad = grid_n * nb

    # One-time weight / bias packing (tiny; fused by XLA).
    w_banded = _build_banded_weight(w1, w3, Cin, Cx1, Cx3, W, Kb, WCp)
    b_row = jnp.pad(jnp.tile(jnp.concatenate([b1, b3]), W),
                    (0, WCp - WC0)).astype(jnp.float32)[None, :]

    # Input glue: NCHW -> zero-padded NHWC rows, lane-padded, bf16 for DMA+MXU.
    # TODO(synk): avoidable if the surrounding model stays NHWC end-to-end.
    x_nhwc = jnp.transpose(x_nchw, (0, 2, 3, 1))
    x_pad = jnp.pad(x_nhwc, ((0, Npad - N), (1, 1 + Hpad - H), (1, 1), (0, 0)))
    x_rows = x_pad.reshape(Npad, Hpad + 2, Wp * Cin)
    x_rows = jnp.pad(x_rows, ((0, 0), (0, 0), (0, Kb - Wp * Cin)))
    x_rows = x_rows.astype(jnp.bfloat16)

    # Weight/bias block indices are constant along n (and along c when
    # grid_c == 1): single-buffer them when the API supports it.
    if grid_c == 1 and _SINGLE_BUFFER_MODE is not None:
        w_spec = pl.BlockSpec((3 * Kb, ct), lambda n, c: (0, c),
                              pipeline_mode=_SINGLE_BUFFER_MODE)
        b_spec = pl.BlockSpec((1, ct), lambda n, c: (0, c),
                              pipeline_mode=_SINGLE_BUFFER_MODE)
    else:
        w_spec = pl.BlockSpec((3 * Kb, ct), lambda n, c: (0, c))
        b_spec = pl.BlockSpec((1, ct), lambda n, c: (0, c))

    flops = 2 * (Npad * Hpad) * (3 * Kb) * WCp
    bytes_accessed = (Npad * (Hpad + 2) * Kb * 2 + 3 * Kb * WCp * 2
                      + WCp * 4 + Npad * Hpad * WCp * out_itemsize)

    out = pl.pallas_call(
        _expand_block_kernel,
        out_shape=jax.ShapeDtypeStruct((Npad, Hpad, WCp), x_nchw.dtype),
        grid_spec=pltpu.PrefetchScalarGridSpec(
            num_scalar_prefetch=0,
            grid=(grid_n, grid_c),
            in_specs=[
                pl.BlockSpec((nb, Hpad + 2, Kb), lambda n, c: (n, 0, 0)),
                w_spec,
                b_spec,
            ],
            out_specs=pl.BlockSpec((nb, Hpad, ct), lambda n, c: (n, 0, c)),
        ),
        compiler_params=pltpu.CompilerParams(
            dimension_semantics=("parallel", "parallel"),
            vmem_limit_bytes=vmem_limit),
        cost_estimate=pl.CostEstimate(
            flops=flops, transcendentals=0, bytes_accessed=bytes_accessed),
    )(x_rows, w_banded, b_row)

    out = out[:N, :H, :WC0].reshape(N, H, W, Cout)
    return jnp.transpose(out, (0, 3, 1, 2))       # back to PyTorch NCHW


def _reference_forward(x_nchw, w1, b1, w3, b3):
    """Pure-JAX reference (lax conv) for correctness checking."""
    Cx1 = w1.shape[-1]
    Cx3 = w3.shape[-1]
    w1_oihw = jnp.transpose(w1, (1, 0))[:, :, None, None]          # (Cx1,Cin,1,1)
    w3_oihw = jnp.transpose(w3, (3, 2, 0, 1))                       # (Cx3,Cin,3,3)
    y1 = jax.lax.conv_general_dilated(
        x_nchw, w1_oihw, window_strides=(1, 1), padding="VALID",
        dimension_numbers=("NCHW", "OIHW", "NCHW"))
    y1 = jnp.maximum(y1 + b1.reshape(1, Cx1, 1, 1), 0.0)
    y3 = jax.lax.conv_general_dilated(
        x_nchw, w3_oihw, window_strides=(1, 1), padding=((1, 1), (1, 1)),
        dimension_numbers=("NCHW", "OIHW", "NCHW"))
    y3 = jnp.maximum(y3 + b3.reshape(1, Cx3, 1, 1), 0.0)
    return jnp.concatenate([y1, y3], axis=1)


if __name__ == "__main__":
    key = jax.random.PRNGKey(0)
    k_x, k_w1, k_b1, k_w3, k_b3 = jax.random.split(key, 5)

    # Small shapes consistent with expand_block(input_channel=4, channel_x1=8,
    # channel_x3=8).
    N, Cin, H, W = 2, 4, 16, 16
    Cx1, Cx3 = 8, 8

    x = jax.random.normal(k_x, (N, Cin, H, W), dtype=jnp.float32)
    w1 = jax.random.normal(k_w1, (Cin, Cx1), dtype=jnp.float32) * 0.1
    b1 = jax.random.normal(k_b1, (Cx1,), dtype=jnp.float32) * 0.1
    w3 = jax.random.normal(k_w3, (3, 3, Cin, Cx3), dtype=jnp.float32) * 0.1
    b3 = jax.random.normal(k_b3, (Cx3,), dtype=jnp.float32) * 0.1

    fwd = jax.jit(expand_block_forward)
    out = jax.block_until_ready(fwd(x, w1, b1, w3, b3))

    ref = _reference_forward(x, w1, b1, w3, b3)
    assert out.shape == (N, Cx1 + Cx3, H, W), out.shape
    # bf16 MXU operands with f32 accumulation: loosened tolerance per review.
    assert jnp.allclose(out, ref, atol=5e-2, rtol=5e-2), "mismatch vs reference"

    print("KERNEL_OK")
</pallas_src>

<mosaic_0001>
module attributes {stable_mosaic.version = 11 : i64} {
  func.func @_copy(%arg0: i32, %arg1: memref<8x128xf32, #tpu.memory_space<vmem>>, %arg2: memref<8x128xf32, #tpu.memory_space<vmem>>) attributes {dimension_semantics = [#tpu.dimension_semantics<arbitrary>], iteration_bounds = array<i64: 1>, scalar_prefetch = 0 : i64, scratch_operands = 0 : i64, tpu.core_type = #tpu.core_type<tc>, window_params = [{pipeline_mode = #tpu.pipeline_mode<synchronous>, transform_indices = @transform_0, window_bounds = array<i64: 8, 128>}, {pipeline_mode = #tpu.pipeline_mode<synchronous>, transform_indices = @transform_1, window_bounds = array<i64: 8, 128>}]} {
    %c0 = arith.constant 0 : index
    %c0_0 = arith.constant 0 : index
    %0 = vector.load %arg1[%c0, %c0_0] : memref<8x128xf32, #tpu.memory_space<vmem>>, vector<8x128xf32>
    %c0_1 = arith.constant 0 : index
    %c0_2 = arith.constant 0 : index
    %1 = vector.load %arg2[%c0_1, %c0_2] : memref<8x128xf32, #tpu.memory_space<vmem>>, vector<8x128xf32>
    tpu.vector_store %arg2[%c0_1, %c0_2], %0 {strides = array<i32>} : memref<8x128xf32, #tpu.memory_space<vmem>>, vector<8x128xf32>,
    return
  }
  func.func @transform_0(%arg0: i32) -> (i32, i32) {
    %c0_i32 = arith.constant 0 : i32
    %c0_i32_0 = arith.constant 0 : i32
    %c0_i32_1 = arith.constant 0 : i32
    return %c0_i32, %c0_i32_0 : i32, i32
  }
  func.func @transform_1(%arg0: i32) -> (i32, i32) {
    %c0_i32 = arith.constant 0 : i32
    %c0_i32_0 = arith.constant 0 : i32
    %c0_i32_1 = arith.constant 0 : i32
    return %c0_i32, %c0_i32_0 : i32, i32
  }
}

module attributes {stable_mosaic.version = 11 : i64} {
  func.func @_expand_block_kernel(%arg0: i32, %arg1: i32, %arg2: memref<2x18x128xbf16, #tpu.memory_space<vmem>>, %arg3: memref<384x256xbf16, #tpu.memory_space<vmem>>, %arg4: memref<1x256xf32, #tpu.memory_space<vmem>>, %arg5: memref<2x16x256xf32, #tpu.memory_space<vmem>>) attributes {dimension_semantics = [#tpu.dimension_semantics<parallel>, #tpu.dimension_semantics<parallel>], iteration_bounds = array<i64: 1, 1>, scalar_prefetch = 0 : i64, scratch_operands = 0 : i64, tpu.core_type = #tpu.core_type<tc>, window_params = [{transform_indices = @transform_0, window_bounds = array<i64: 2, 18, 128>}, {transform_indices = @transform_1, window_bounds = array<i64: 384, 256>}, {transform_indices = @transform_2, window_bounds = array<i64: 1, 256>}, {transform_indices = @transform_3, window_bounds = array<i64: 2, 16, 256>}]} {
    %c0 = arith.constant 0 : index
    %c0_0 = arith.constant 0 : index
    %c0_1 = arith.constant 0 : index
    %0 = vector.load %arg2[%c0, %c0_0, %c0_1] : memref<2x18x128xbf16, #tpu.memory_space<vmem>>, vector<2x18x128xbf16>
    %1 = arith.extf %0 : vector<2x18x128xbf16> to vector<2x18x128xf32>
    %2 = vector.extract_strided_slice %1 {offsets = [0, 0, 0], sizes = [2, 16, 128], strides = [1, 1, 1]} : vector<2x18x128xf32> to vector<2x16x128xf32>
    %3 = vector.extract_strided_slice %1 {offsets = [0, 1, 0], sizes = [2, 16, 128], strides = [1, 1, 1]} : vector<2x18x128xf32> to vector<2x16x128xf32>
    %4 = vector.extract_strided_slice %1 {offsets = [0, 2, 0], sizes = [2, 16, 128], strides = [1, 1, 1]} : vector<2x18x128xf32> to vector<2x16x128xf32>
    %5 = tpu.concatenate %2, %3, %4 in 2 : vector<2x16x128xf32>, vector<2x16x128xf32>, vector<2x16x128xf32> -> vector<2x16x384xf32>
    %6 = vector.shape_cast %5 : vector<2x16x384xf32> to vector<32x384xf32>
    %7 = arith.truncf %6 : vector<32x384xf32> to vector<32x384xbf16>
    %c0_2 = arith.constant 0 : index
    %c0_3 = arith.constant 0 : index
    %8 = vector.load %arg3[%c0_2, %c0_3] : memref<384x256xbf16, #tpu.memory_space<vmem>>, vector<384x256xbf16>
    %cst = arith.constant dense<0.000000e+00> : vector<32x256xf32>
    %9 = tpu.matmul %7, %8, %cst {dimension_numbers = #tpu.dot_dimension_numbers<[1], [0], [0], [1], [0, 0, 1, 1], [], []>} : vector<32x384xbf16>, vector<384x256xbf16>, vector<32x256xf32> -> vector<32x256xf32>
    %c0_4 = arith.constant 0 : index
    %c0_5 = arith.constant 0 : index
    %10 = vector.load %arg4[%c0_4, %c0_5] : memref<1x256xf32, #tpu.memory_space<vmem>>, vector<1x256xf32>
    %11 = vector.broadcast %10 : vector<1x256xf32> to vector<32x256xf32>
    %12 = arith.addf %9, %11 : vector<32x256xf32>
    %cst_6 = arith.constant 0.000000e+00 : f32
    %13 = vector.broadcast %cst_6 : f32 to vector<32x256xf32>
    %14 = arith.maximumf %12, %13 : vector<32x256xf32>
    %15 = vector.shape_cast %14 : vector<32x256xf32> to vector<2x16x256xf32>
    %c0_7 = arith.constant 0 : index
    %c0_8 = arith.constant 0 : index
    %c0_9 = arith.constant 0 : index
    %16 = vector.load %arg5[%c0_7, %c0_8, %c0_9] : memref<2x16x256xf32, #tpu.memory_space<vmem>>, vector<2x16x256xf32>
    tpu.vector_store %arg5[%c0_7, %c0_8, %c0_9], %15 {strides = array<i32>} : memref<2x16x256xf32, #tpu.memory_space<vmem>>, vector<2x16x256xf32>,
    return
  }
  func.func @transform_0(%arg0: i32, %arg1: i32) -> (i32, i32, i32) {
    %c0_i32 = arith.constant 0 : i32
    %c0_i32_0 = arith.constant 0 : i32
    %c0_i32_1 = arith.constant 0 : i32
    return %arg0, %c0_i32, %c0_i32_0 : i32, i32, i32
  }
  func.func @transform_1(%arg0: i32, %arg1: i32) -> (i32, i32) {
    %c0_i32 = arith.constant 0 : i32
    %c0_i32_0 = arith.constant 0 : i32
    return %c0_i32, %arg1 : i32, i32
  }
  func.func @transform_2(%arg0: i32, %arg1: i32) -> (i32, i32) {
    %c0_i32 = arith.constant 0 : i32
    %c0_i32_0 = arith.constant 0 : i32
    return %c0_i32, %arg1 : i32, i32
  }
  func.func @transform_3(%arg0: i32, %arg1: i32) -> (i32, i32, i32) {
    %c0_i32 = arith.constant 0 : i32
    %c0_i32_0 = arith.constant 0 : i32
    return %arg0, %c0_i32, %arg1 : i32, i32, i32
  }
}

</mosaic_0001>

<llo_original>
// kernel: tpu_custom_call.1
$region0: #{tpu_custom_call.1}
  #allocation0 [shape = 'u32[]', space=smem, size = 0x4, offset = 0x4, fixed_abs, tag = 'smem constant byte address 0x4 - core index']
  #allocation1 [shape = 'u32[144,128]{1,0:T(1,128)}', space=vmem, size = 0x12000, scoped, tag = 'internal scratch']
  %s0 = inlined_call_operand.hbm [shape: f32[8,128], index: 0, kind: input, shape index: {}]
  %s1 = inlined_call_operand.hbm [shape: f32[8,128], index: 1, kind: output, shape index: {}]
  %s2 = sld [smem:[#allocation0]]
  $region18: #{tpu_custom_call.1} parent=0
    _
  %s4 = ssub.s32 1, %s2
  %s5 = scalar_select 0, %s4, %s2
  $region1: #{tpu_custom_call.1} parent=0
    #allocation2 [shape = 'u8[4096]{0}', space=vmem, size = 0x1000, scoped, tag = 'input window, operand 0, single buffered']
    #allocation3 [shape = 's32[1]{0}', space=sflag, size = 0x4, scoped, tag = 'scoped memory for tpu_custom_call.1']
    #allocation4 [shape = 's32[1]{0}', space=sflag, size = 0x4, scoped, tag = 'scoped memory for tpu_custom_call.1']
    #allocation5 [shape = 'u8[4096]{0}', space=vmem, size = 0x1000, scoped, tag = 'output window, operand 0, single buffered']
    %6 = vsyncpa [#allocation3], 0
    %7 = vsyncpa [#allocation4], 0
    // Predicated region
    $region2: #{tpu_custom_call.1} parent=1 // pred_check
      _
    $region3: #{tpu_custom_call.1} parent=1 // pred_check_branch
      %9 = sbr.rel (0) target = $region5
    $region4: #{tpu_custom_call.1} parent=1 // pred_region
      %s11 = ssub.s32 128, 128
      %12 = vsyncadd [#allocation3], %s11
      %s14 = sshll.u32 [#allocation2], 4
      %s15 = int_to_ptr.vmem [resolvable:$true] %s14
      %17 = dma.hbm_to_vmem [thread:$0]  %s0, 128, %s15, [#allocation3]
    $region5: #{tpu_custom_call.1} parent=1 // pred_fallthru
      _
    // Predicated region
    $region6: #{tpu_custom_call.1} parent=1 // pred_check
      _
    $region7: #{tpu_custom_call.1} parent=1 // pred_check_branch
      %19 = sbr.rel (0) target = $region9
    $region8: #{tpu_custom_call.1} parent=1 // pred_region
      %20 = dma.done [#allocation3], 128
    $region9: #{tpu_custom_call.1} parent=1 // pred_fallthru
      _
    %v21 = vld [vmem:[#allocation2] sm:$0xff]
    %22 = vst [vmem:[#allocation5] sm:$0xff] %v21
    // Predicated region
    $region10: #{tpu_custom_call.1} parent=1 // pred_check
      _
    $region11: #{tpu_custom_call.1} parent=1 // pred_check_branch
      %24 = sbr.rel (0) target = $region13
    $region12: #{tpu_custom_call.1} parent=1 // pred_region
      %s26 = ssub.s32 128, 128
      %27 = vsyncadd [#allocation4], %s26
      %s29 = sshll.u32 [#allocation5], 4
      %s30 = int_to_ptr.vmem [resolvable:$true] %s29
      %32 = dma.vmem_to_hbm [thread:$0]  %s30, 128, %s1, [#allocation4]
    $region13: #{tpu_custom_call.1} parent=1 // pred_fallthru
      _
    // Predicated region
    $region14: #{tpu_custom_call.1} parent=1 // pred_check
      _
    $region15: #{tpu_custom_call.1} parent=1 // pred_check_branch
      %34 = sbr.rel (0) target = $region17
    $region16: #{tpu_custom_call.1} parent=1 // pred_region
      %35 = dma.done [#allocation4], 128
    $region17: #{tpu_custom_call.1} parent=1 // pred_fallthru
      _
    %36 = vsyncpa [#allocation3], 1
    %37 = vsyncpa [#allocation4], 1

// kernel: tile.8
$region0: #{tile.8}
  #allocation0 [shape = 's32[1]{0}', space=sflag, size = 0x4, scoped, tag = 'scoped memory for tile.8']
  %s0 = inlined_call_operand.vmem [shape: f32[16], index: 0, kind: input, shape index: {}]
  %s1 = inlined_call_operand.vmem [shape: f32[16,16], index: 1, kind: output, shape index: {}]
  // Predicated region
  $region2: #{tile.8} parent=0 // pred_check
    _
  $region3: #{tile.8} parent=0 // pred_check_branch
    %3 = sbr.rel (0) target = $region5
  $region4: #{tile.8} parent=0 // pred_region
    _
  $region5: #{tile.8} parent=0 // pred_fallthru
    _
  %v4 = vld [vmem:[%s0] ss:$0 sm:$0xff]
  %5 = vst [vmem:[%s1] sm:$0xff] %v4
  %s6 = scalar_lea.vmem %s1, 8
  %7 = vst [vmem:[%s6] sm:$0xff] %v4

// kernel: expand_block_forward.1
$region0: #{expand_block_forward.1}
  #allocation0 [shape = 'u32[]', space=smem, size = 0x4, offset = 0x4, fixed_abs, tag = 'smem constant byte address 0x4 - core index']
  #allocation1 [shape = 'u32[144,128]{1,0:T(1,128)}', space=vmem, size = 0x12000, scoped, tag = 'internal scratch']
  %s0 = inlined_call_operand.vmem [shape: bf16[2,18,128], index: 0, kind: input, shape index: {}]
  %s1 = inlined_call_operand.vmem [shape: bf16[384,256], index: 1, kind: input, shape index: {}]
  %s2 = inlined_call_operand.vmem [shape: f32[1,256], index: 2, kind: input, shape index: {}]
  %s3 = inlined_call_operand.vmem [shape: f32[2,16,256], index: 3, kind: output, shape index: {}]
  %s4 = sld [smem:[#allocation0]]
  $region22: #{expand_block_forward.1} parent=0
    _
  %s6 = ssub.s32 1, %s4
  %s7 = scalar_select 0, %s6, %s4
  // Predicated region
  $region2: #{expand_block_forward.1} parent=0 // pred_check
    _
  $region3: #{expand_block_forward.1} parent=0 // pred_check_branch
    %9 = sbr.rel (0) target = $region5
  $region4: #{expand_block_forward.1} parent=0 // pred_region
    _
  $region5: #{expand_block_forward.1} parent=0 // pred_fallthru
    _
  // Predicated region
  $region6: #{expand_block_forward.1} parent=0 // pred_check
    _
  $region7: #{expand_block_forward.1} parent=0 // pred_check_branch
    %11 = sbr.rel (0) target = $region9
  $region8: #{expand_block_forward.1} parent=0 // pred_region
    _
  $region9: #{expand_block_forward.1} parent=0 // pred_fallthru
    _
  // Predicated region
  $region10: #{expand_block_forward.1} parent=0 // pred_check
    _
  $region11: #{expand_block_forward.1} parent=0 // pred_check_branch
    %13 = sbr.rel (0) target = $region13
  $region12: #{expand_block_forward.1} parent=0 // pred_region
    _
  $region13: #{expand_block_forward.1} parent=0 // pred_fallthru
    _
  %v15 = vld [vmem:[%s0] sm:$0xf]
  %v16 = vld [vmem:[%s0 + $0x4] sm:$0xf]
  %v17 = vld [vmem:[%s0 + $0x8] sm:$0x1]
  %v18 = vld [vmem:[%s0 + $0xc] sm:$0xf]
  %v19 = vld [vmem:[%s0 + $0x10] sm:$0xf]
  %v20 = vld [vmem:[%s0 + $0x14] sm:$0x1]
  %v21 = vunpack.c.l.bf16 %v15
  %v22 = vunpack.c.l.bf16 %v16
  %v23 = vunpack.c.l.bf16 %v17
  %v24 = vunpack.c.l.bf16 %v18
  %v25 = vunpack.c.l.bf16 %v19
  %v26 = vunpack.c.l.bf16 %v20
  %vm33 = vcmask 1046528
  %v34 = vrot.slane %v21, 1
  %v35 = vrot.slane %v22, 1
  %v36 = vsel %vm33, %v34, %v35
  %v37 = vrot.slane %v23, 1
  %v38 = vsel %vm33, %v35, %v37
  %v39 = vrot.slane %v24, 1
  %v40 = vrot.slane %v25, 1
  %v41 = vsel %vm33, %v39, %v40
  %v42 = vrot.slane %v26, 1
  %v43 = vsel %vm33, %v40, %v42
  %vm48 = vcmask 1045504
  %v49 = vrot.slane %v21, 2
  %v50 = vrot.slane %v22, 2
  %v51 = vsel %vm48, %v49, %v50
  %v52 = vrot.slane %v23, 2
  %v53 = vsel %vm48, %v50, %v52
  %v54 = vrot.slane %v24, 2
  %v55 = vrot.slane %v25, 2
  %v56 = vsel %vm48, %v54, %v55
  %v57 = vrot.slane %v26, 2
  %v58 = vsel %vm48, %v55, %v57
  %v63 = vpack.c.bf16 %v22, %v21
  %v64 = vpack.c.bf16 %v38, %v36
  %v65 = vpack.c.bf16 %v53, %v51
  %v66 = vpack.c.bf16 %v25, %v24
  %v67 = vpack.c.bf16 %v43, %v41
  %v68 = vpack.c.bf16 %v58, %v56
  %v69 = vld [vmem:[%s1] sm:$0xff]
  %v70 = vld [vmem:[%s1 + $0x8] sm:$0xff]
  %v71 = vld [vmem:[%s1 + $0x10] sm:$0xff]
  %v72 = vld [vmem:[%s1 + $0x18] sm:$0xff]
  %v73 = vld [vmem:[%s1 + $0x20] sm:$0xff]
  %v74 = vld [vmem:[%s1 + $0x28] sm:$0xff]
  %v75 = vld [vmem:[%s1 + $0x30] sm:$0xff]
  %v76 = vld [vmem:[%s1 + $0x38] sm:$0xff]
  %v77 = vld [vmem:[%s1 + $0x40] sm:$0xff]
  %v78 = vld [vmem:[%s1 + $0x48] sm:$0xff]
  %v79 = vld [vmem:[%s1 + $0x50] sm:$0xff]
  %v80 = vld [vmem:[%s1 + $0x58] sm:$0xff]
  %v81 = vld [vmem:[%s1 + $0x60] sm:$0xff]
  %v82 = vld [vmem:[%s1 + $0x68] sm:$0xff]
  %v83 = vld [vmem:[%s1 + $0x70] sm:$0xff]
  %v84 = vld [vmem:[%s1 + $0x78] sm:$0xff]
  %v85 = vld [vmem:[%s1 + $0x80] sm:$0xff]
  %v86 = vld [vmem:[%s1 + $0x88] sm:$0xff]
  %v87 = vld [vmem:[%s1 + $0x90] sm:$0xff]
  %v88 = vld [vmem:[%s1 + $0x98] sm:$0xff]
  %v89 = vld [vmem:[%s1 + $0xa0] sm:$0xff]
  %v90 = vld [vmem:[%s1 + $0xa8] sm:$0xff]
  %v91 = vld [vmem:[%s1 + $0xb0] sm:$0xff]
  %v92 = vld [vmem:[%s1 + $0xb8] sm:$0xff]
  %v93 = vld [vmem:[%s1 + $0xc0] sm:$0xff]
  %v94 = vld [vmem:[%s1 + $0xc8] sm:$0xff]
  %v95 = vld [vmem:[%s1 + $0xd0] sm:$0xff]
  %v96 = vld [vmem:[%s1 + $0xd8] sm:$0xff]
  %v97 = vld [vmem:[%s1 + $0xe0] sm:$0xff]
  %v98 = vld [vmem:[%s1 + $0xe8] sm:$0xff]
  %v99 = vld [vmem:[%s1 + $0xf0] sm:$0xff]
  %v100 = vld [vmem:[%s1 + $0xf8] sm:$0xff]
  %v101 = vld [vmem:[%s1 + $0x100] sm:$0xff]
  %v102 = vld [vmem:[%s1 + $0x108] sm:$0xff]
  %v103 = vld [vmem:[%s1 + $0x110] sm:$0xff]
  %v104 = vld [vmem:[%s1 + $0x118] sm:$0xff]
  %v105 = vld [vmem:[%s1 + $0x120] sm:$0xff]
  %v106 = vld [vmem:[%s1 + $0x128] sm:$0xff]
  %v107 = vld [vmem:[%s1 + $0x130] sm:$0xff]
  %v108 = vld [vmem:[%s1 + $0x138] sm:$0xff]
  %v109 = vld [vmem:[%s1 + $0x140] sm:$0xff]
  %v110 = vld [vmem:[%s1 + $0x148] sm:$0xff]
  %v111 = vld [vmem:[%s1 + $0x150] sm:$0xff]
  %v112 = vld [vmem:[%s1 + $0x158] sm:$0xff]
  %v113 = vld [vmem:[%s1 + $0x160] sm:$0xff]
  %v114 = vld [vmem:[%s1 + $0x168] sm:$0xff]
  %v115 = vld [vmem:[%s1 + $0x170] sm:$0xff]
  %v116 = vld [vmem:[%s1 + $0x178] sm:$0xff]
  %v117 = vld [vmem:[%s2] sm:$0x3]
  %v119 = vlaneseq
  %v120 = vshrl.u32 %v119, 7
  %v121 = vsub.s32 0, %v120
  %v122 = vrot.slane %v117, %v121
  %v123 = vlaneseq
  %v124 = vshrl.u32 %v123, 7
  %v125 = vsub.s32 1, %v124
  %v126 = vrot.slane %v117, %v125
  %v177 = vunpack.c.l.b16 %v69
  %v178 = vunpack.c.h.b16 %v69
  %v179 = vunpack.c.l.b16 %v70
  %v180 = vunpack.c.h.b16 %v70
  %v181 = vunpack.c.l.b16 %v71
  %v182 = vunpack.c.h.b16 %v71
  %v183 = vunpack.c.l.b16 %v72
  %v184 = vunpack.c.h.b16 %v72
  %v185 = vunpack.c.l.b16 %v73
  %v186 = vunpack.c.h.b16 %v73
  %v187 = vunpack.c.l.b16 %v74
  %v188 = vunpack.c.h.b16 %v74
  %v189 = vunpack.c.l.b16 %v75
  %v190 = vunpack.c.h.b16 %v75
  %v191 = vunpack.c.l.b16 %v76
  %v192 = vunpack.c.h.b16 %v76
  %v193 = vunpack.c.l.b16 %v77
  %v194 = vunpack.c.h.b16 %v77
  %v195 = vunpack.c.l.b16 %v78
  %v196 = vunpack.c.h.b16 %v78
  %v197 = vunpack.c.l.b16 %v79
  %v198 = vunpack.c.h.b16 %v79
  %v199 = vunpack.c.l.b16 %v80
  %v200 = vunpack.c.h.b16 %v80
  %v201 = vunpack.c.l.b16 %v81
  %v202 = vunpack.c.h.b16 %v81
  %v203 = vunpack.c.l.b16 %v82
  %v204 = vunpack.c.h.b16 %v82
  %v205 = vunpack.c.l.b16 %v83
  %v206 = vunpack.c.h.b16 %v83
  %v207 = vunpack.c.l.b16 %v84
  %v208 = vunpack.c.h.b16 %v84
  %v209 = vunpack.c.l.b16 %v85
  %v210 = vunpack.c.h.b16 %v85
  %v211 = vunpack.c.l.b16 %v86
  %v212 = vunpack.c.h.b16 %v86
  %v213 = vunpack.c.l.b16 %v87
  %v214 = vunpack.c.h.b16 %v87
  %v215 = vunpack.c.l.b16 %v88
  %v216 = vunpack.c.h.b16 %v88
  %v217 = vunpack.c.l.b16 %v89
  %v218 = vunpack.c.h.b16 %v89
  %v219 = vunpack.c.l.b16 %v90
  %v220 = vunpack.c.h.b16 %v90
  %v221 = vunpack.c.l.b16 %v91
  %v222 = vunpack.c.h.b16 %v91
  %v223 = vunpack.c.l.b16 %v92
  %v224 = vunpack.c.h.b16 %v92
  %v225 = vunpack.c.l.b16 %v93
  %v226 = vunpack.c.h.b16 %v93
  %v227 = vunpack.c.l.b16 %v94
  %v228 = vunpack.c.h.b16 %v94
  %v229 = vunpack.c.l.b16 %v95
  %v230 = vunpack.c.h.b16 %v95
  %v231 = vunpack.c.l.b16 %v96
  %v232 = vunpack.c.h.b16 %v96
  %v233 = vunpack.c.l.b16 %v97
  %v234 = vunpack.c.h.b16 %v97
  %v235 = vunpack.c.l.b16 %v98
  %v236 = vunpack.c.h.b16 %v98
  %v237 = vunpack.c.l.b16 %v99
  %v238 = vunpack.c.h.b16 %v99
  %v239 = vunpack.c.l.b16 %v100
  %v240 = vunpack.c.h.b16 %v100
  %v241 = vunpack.c.l.b16 %v101
  %v242 = vunpack.c.h.b16 %v101
  %v243 = vunpack.c.l.b16 %v102
  %v244 = vunpack.c.h.b16 %v102
  %v245 = vunpack.c.l.b16 %v103
  %v246 = vunpack.c.h.b16 %v103
  %v247 = vunpack.c.l.b16 %v104
  %v248 = vunpack.c.h.b16 %v104
  %v249 = vunpack.c.l.b16 %v105
  %v250 = vunpack.c.h.b16 %v105
  %v251 = vunpack.c.l.b16 %v106
  %v252 = vunpack.c.h.b16 %v106
  %v253 = vunpack.c.l.b16 %v107
  %v254 = vunpack.c.h.b16 %v107
  %v255 = vunpack.c.l.b16 %v108
  %v256 = vunpack.c.h.b16 %v108
  %v257 = vunpack.c.l.b16 %v109
  %v258 = vunpack.c.h.b16 %v109
  %v259 = vunpack.c.l.b16 %v110
  %v260 = vunpack.c.h.b16 %v110
  %v261 = vunpack.c.l.b16 %v111
  %v262 = vunpack.c.h.b16 %v111
  %v263 = vunpack.c.l.b16 %v112
  %v264 = vunpack.c.h.b16 %v112
  %v265 = vunpack.c.l.b16 %v113
  %v266 = vunpack.c.h.b16 %v113
  %v267 = vunpack.c.l.b16 %v114
  %v268 = vunpack.c.h.b16 %v114
  %v269 = vunpack.c.l.b16 %v115
  %v270 = vunpack.c.h.b16 %v115
  %v271 = vunpack.c.l.b16 %v116
  %v272 = vunpack.c.h.b16 %v116
  %v273 = vpack.c.b16 %v179, %v177
  %v274 = vpack.c.b16 %v180, %v178
  %v275 = vpack.c.b16 %v183, %v181
  %v276 = vpack.c.b16 %v184, %v182
  %v277 = vpack.c.b16 %v187, %v185
  %v278 = vpack.c.b16 %v188, %v186
  %v279 = vpack.c.b16 %v191, %v189
  %v280 = vpack.c.b16 %v192, %v190
  %v281 = vpack.c.b16 %v195, %v193
  %v282 = vpack.c.b16 %v196, %v194
  %v283 = vpack.c.b16 %v199, %v197
  %v284 = vpack.c.b16 %v200, %v198
  %v285 = vpack.c.b16 %v203, %v201
  %v286 = vpack.c.b16 %v204, %v202
  %v287 = vpack.c.b16 %v207, %v205
  %v288 = vpack.c.b16 %v208, %v206
  %v289 = vpack.c.b16 %v211, %v209
  %v290 = vpack.c.b16 %v212, %v210
  %v291 = vpack.c.b16 %v215, %v213
  %v292 = vpack.c.b16 %v216, %v214
  %v293 = vpack.c.b16 %v219, %v217
  %v294 = vpack.c.b16 %v220, %v218
  %v295 = vpack.c.b16 %v223, %v221
  %v296 = vpack.c.b16 %v224, %v222
  %v297 = vpack.c.b16 %v227, %v225
  %v298 = vpack.c.b16 %v228, %v226
  %v299 = vpack.c.b16 %v231, %v229
  %v300 = vpack.c.b16 %v232, %v230
  %v301 = vpack.c.b16 %v235, %v233
  %v302 = vpack.c.b16 %v236, %v234
  %v303 = vpack.c.b16 %v239, %v237
  %v304 = vpack.c.b16 %v240, %v238
  %v305 = vpack.c.b16 %v243, %v241
  %v306 = vpack.c.b16 %v244, %v242
  %v307 = vpack.c.b16 %v247, %v245
  %v308 = vpack.c.b16 %v248, %v246
  %v309 = vpack.c.b16 %v251, %v249
  %v310 = vpack.c.b16 %v252, %v250
  %v311 = vpack.c.b16 %v255, %v253
  %v312 = vpack.c.b16 %v256, %v254
  %v313 = vpack.c.b16 %v259, %v257
  %v314 = vpack.c.b16 %v260, %v258
  %v315 = vpack.c.b16 %v263, %v261
  %v316 = vpack.c.b16 %v264, %v262
  %v317 = vpack.c.b16 %v267, %v265
  %v318 = vpack.c.b16 %v268, %v266
  %v319 = vpack.c.b16 %v271, %v269
  %v320 = vpack.c.b16 %v272, %v270
  %369 = vmatprep.subr.bf16.mxu0 %v288
  %370 = vmatpush1.bf16.msra.mxu0 %v287
  %371 = vmatprep.subr.bf16.mxu0 %v286
  %372 = vmatpush1.bf16.msra.mxu0 %v285
  %373 = vmatprep.subr.bf16.mxu0 %v284
  %374 = vmatpush1.bf16.msra.mxu0 %v283
  %375 = vmatprep.subr.bf16.mxu0 %v282
  %376 = vmatpush1.bf16.msra.mxu0 %v281
  %377 = vmatprep.subr.bf16.mxu0 %v280
  %378 = vmatpush1.bf16.msra.mxu0 %v279
  %379 = vmatprep.subr.bf16.mxu0 %v278
  %380 = vmatpush1.bf16.msra.mxu0 %v277
  %381 = vmatprep.subr.bf16.mxu0 %v276
  %382 = vmatpush1.bf16.msra.mxu0 %v275
  %383 = vmatprep.subr.bf16.mxu0 %v274
  %384 = vmatpush1.bf16.msra.mxu0 %v273
  %385 = vmatprep.subr.bf16.mxu0 %v304
  %386 = vmatpush2.bf16.msra.mxu0 %v303
  %387 = vmatprep.subr.bf16.mxu0 %v302
  %388 = vmatpush2.bf16.msra.mxu0 %v301
  %389 = vmatprep.subr.bf16.mxu0 %v300
  %390 = vmatpush2.bf16.msra.mxu0 %v299
  %391 = vmatprep.subr.bf16.mxu0 %v298
  %392 = vmatpush2.bf16.msra.mxu0 %v297
  %393 = vmatprep.subr.bf16.mxu0 %v296
  %394 = vmatpush2.bf16.msra.mxu0 %v295
  %395 = vmatprep.subr.bf16.mxu0 %v294
  %396 = vmatpush2.bf16.msra.mxu0 %v293
  %397 = vmatprep.subr.bf16.mxu0 %v292
  %398 = vmatpush2.bf16.msra.mxu0 %v291
  %399 = vmatprep.subr.bf16.mxu0 %v290
  %400 = vmatpush2.bf16.msra.mxu0 %v289
  %401 = vmatprep.mubr.bf16.mxu0 %v64
  %402 = vmatmul.mubr.bf16.gmra.mxu0 %v63
  %v403 = vpop.f32.mrf.mxu0
  %v404 = vadd.f32 %v122, %v403
  %v405 = vpop.f32.mrf.mxu0
  %v406 = vadd.f32 %v126, %v405
  %v407 = vpop.f32.mrf.mxu0
  %v408 = vadd.f32 %v122, %v407
  %v409 = vpop.f32.mrf.mxu0
  %v410 = vadd.f32 %v126, %v409
  %411 = vmatprep.mubr.bf16.mxu0 %v67
  %412 = vmatmul.mubr.bf16.gmra.mxu0 %v66
  %v413 = vpop.f32.mrf.mxu0
  %v414 = vadd.f32 %v122, %v413
  %v415 = vpop.f32.mrf.mxu0
  %v416 = vadd.f32 %v126, %v415
  %v417 = vpop.f32.mrf.mxu0
  %v418 = vadd.f32 %v122, %v417
  %v419 = vpop.f32.mrf.mxu0
  %v420 = vadd.f32 %v126, %v419
  %421 = vdwg.mxu0
  %422 = vmatprep.subr.bf16.mxu0 %v320
  %423 = vmatpush1.bf16.msra.mxu0 %v319
  %424 = vmatprep.subr.bf16.mxu0 %v318
  %425 = vmatpush1.bf16.msra.mxu0 %v317
  %426 = vmatprep.subr.bf16.mxu0 %v316
  %427 = vmatpush1.bf16.msra.mxu0 %v315
  %428 = vmatprep.subr.bf16.mxu0 %v314
  %429 = vmatpush1.bf16.msra.mxu0 %v313
  %430 = vmatprep.subr.bf16.mxu0 %v312
  %431 = vmatpush1.bf16.msra.mxu0 %v311
  %432 = vmatprep.subr.bf16.mxu0 %v310
  %433 = vmatpush1.bf16.msra.mxu0 %v309
  %434 = vmatprep.subr.bf16.mxu0 %v308
  %435 = vmatpush1.bf16.msra.mxu0 %v307
  %436 = vmatprep.subr.bf16.mxu0 %v306
  %437 = vmatpush1.bf16.msra.mxu0 %v305
  %438 = vmatprep.subr.bf16.mxu0 0
  %439 = vmatpush2.bf16.msra.mxu0 0
  %440 = vmatprep.subr.bf16.mxu0 0
  %441 = vmatpush2.bf16.msra.mxu0 0
  %442 = vmatprep.subr.bf16.mxu0 0
  %443 = vmatpush2.bf16.msra.mxu0 0
  %444 = vmatprep.subr.bf16.mxu0 0
  %445 = vmatpush2.bf16.msra.mxu0 0
  %446 = vmatprep.subr.bf16.mxu0 0
  %447 = vmatpush2.bf16.msra.mxu0 0
  %448 = vmatprep.subr.bf16.mxu0 0
  %449 = vmatpush2.bf16.msra.mxu0 0
  %450 = vmatprep.subr.bf16.mxu0 0
  %451 = vmatpush2.bf16.msra.mxu0 0
  %452 = vmatprep.subr.bf16.mxu0 0
  %453 = vmatpush2.bf16.msra.mxu0 0
  %454 = vmatprep.mubr.bf16.mxu0 0
  %455 = vmatmul.mubr.bf16.gmra.mxu0 %v65
  %v456 = vpop.f32.mrf.mxu0
  %v457 = vadd.f32 %v404, %v456
  %v458 = vpop.f32.mrf.mxu0
  %v459 = vadd.f32 %v406, %v458
  %v460 = vpop.f32.mrf.mxu0
  %v461 = vadd.f32 %v408, %v460
  %v462 = vpop.f32.mrf.mxu0
  %v463 = vadd.f32 %v410, %v462
  %464 = vmatprep.mubr.bf16.mxu0 0
  %465 = vmatmul.mubr.bf16.gmra.mxu0 %v68
  %v466 = vpop.f32.mrf.mxu0
  %v467 = vadd.f32 %v414, %v466
  %v468 = vpop.f32.mrf.mxu0
  %v469 = vadd.f32 %v416, %v468
  %v470 = vpop.f32.mrf.mxu0
  %v471 = vadd.f32 %v418, %v470
  %v472 = vpop.f32.mrf.mxu0
  %v473 = vadd.f32 %v420, %v472
  %474 = vdwg.mxu0
  %v475 = vmax.f32 %v457, 0.0
  %v476 = vmax.f32 %v459, 0.0
  %v477 = vmax.f32 %v461, 0.0
  %v478 = vmax.f32 %v463, 0.0
  %v479 = vmax.f32 %v467, 0.0
  %v480 = vmax.f32 %v469, 0.0
  %v481 = vmax.f32 %v471, 0.0
  %v482 = vmax.f32 %v473, 0.0
  %483 = vst [vmem:[%s3] sm:$0xff] %v475
  %484 = vst [vmem:[%s3 + $0x8] sm:$0xff] %v476
  %485 = vst [vmem:[%s3 + $0x10] sm:$0xff] %v477
  %486 = vst [vmem:[%s3 + $0x18] sm:$0xff] %v478
  %487 = vst [vmem:[%s3 + $0x20] sm:$0xff] %v479
  %488 = vst [vmem:[%s3 + $0x28] sm:$0xff] %v480
  %489 = vst [vmem:[%s3 + $0x30] sm:$0xff] %v481
  %490 = vst [vmem:[%s3 + $0x38] sm:$0xff] %v482
  // Predicated region
  $region14: #{expand_block_forward.1} parent=0 // pred_check
    _
  $region15: #{expand_block_forward.1} parent=0 // pred_check_branch
    %492 = sbr.rel (0) target = $region17
  $region16: #{expand_block_forward.1} parent=0 // pred_region
    _
  $region17: #{expand_block_forward.1} parent=0 // pred_fallthru
    _
  // Predicated region
  $region18: #{expand_block_forward.1} parent=0 // pred_check
    _
  $region19: #{expand_block_forward.1} parent=0 // pred_check_branch
    %494 = sbr.rel (0) target = $region21
  $region20: #{expand_block_forward.1} parent=0 // pred_region
    _
  $region21: #{expand_block_forward.1} parent=0 // pred_fallthru
    _

</llo_original>
